<compile_context>
chip_gen: v5e
topology: v5e:2x2
jax: 0.10.0
libtpu: 0.0.40
codegen_flags: <defaults>
</compile_context>

<pallas_src>
import math

import jax
import jax.numpy as jnp
from jax import lax
from jax.experimental import pallas as pl
from jax.experimental.pallas import tpu as pltpu


def _prob_linear_kernel(x_ref, mu_w_ref, logsig2_w_ref, bias_ref, eps_ref,
                        o_ref, var_acc):
    k = pl.program_id(2)

    @pl.when(k == 0)
    def _init():
        # Fold bias into the (k-resident) output block and the 1e-8 floor into
        # the variance accumulator -> no epilogue adds.
        o_ref[...] = jnp.broadcast_to(bias_ref[...], o_ref.shape).astype(
            jnp.float32)
        var_acc[...] = jnp.full(var_acc.shape, 1e-8, dtype=jnp.float32)

    x = x_ref[...]                    # (TM, TK) bf16
    mu_w = mu_w_ref[...]              # (TN, TK) bf16 -- original (n_out, n_in) layout
    logsig2_w = logsig2_w_ref[...]    # (TN, TK) f32

    # Contract x's n_in axis (1) with the weights' n_in axis (1): no transpose.
    dn = (((1,), (1,)), ((), ()))

    # Mean path: native bf16 MXU matmul, f32 accumulation into o_ref.
    o_ref[...] += lax.dot_general(x, mu_w, dn,
                                  preferred_element_type=jnp.float32)

    # Variance path: elementwise math in f32 (clip on VPU, exp on EUP), cast
    # only the dot operands to bf16 for the MXU.
    x2 = jnp.square(x.astype(jnp.float32)).astype(jnp.bfloat16)
    s2_w = jnp.exp(jnp.clip(logsig2_w, -11.0, 11.0)).astype(jnp.bfloat16)
    var_acc[...] += lax.dot_general(x2, s2_w, dn,
                                    preferred_element_type=jnp.float32)

    @pl.when(k == pl.num_programs(2) - 1)
    def _finalize():
        o_ref[...] = o_ref[...] + jnp.sqrt(var_acc[...]) * eps_ref[...]


def _round_up(a, b):
    return (a + b - 1) // b * b


def prob_linear_forward(x, mu_w, logsig2_w, bias, eps, *,
                        tm=1024, tn=512, tk=1024):
    """x: (B, n_in); mu_w, logsig2_w: (n_out, n_in); bias: (n_out,); eps: (B, n_out)."""
    B, n_in = x.shape
    n_out = mu_w.shape[0]

    # Log-variance / bias / noise stay f32; matmul operands go bf16 below.
    logsig2_w = logsig2_w.astype(jnp.float32)
    bias = bias.astype(jnp.float32)
    eps = eps.astype(jnp.float32)

    # Lane-dense tiles: multiples of 128 on n_out/n_in; bf16 x needs the
    # sublane (batch) tile to be a multiple of 16.
    TM = min(tm, _round_up(B, 16))
    TN = min(tn, _round_up(n_out, 128))
    TK = min(tk, _round_up(n_in, 128))

    Bp = _round_up(B, TM)
    Np = _round_up(n_out, TN)
    Kp = _round_up(n_in, TK)

    # Megacore (v7x): make sure the parallel axes expose >= 2 tiles when we
    # can. Prefer splitting TN (does not increase weight HBM traffic); fall
    # back to TM.
    if (Bp // TM) * (Np // TN) < 2:
        if Np >= 256:
            TN = _round_up(Np // 2, 128)
            Np = _round_up(n_out, TN)
        elif Bp >= 32:
            TM = _round_up(Bp // 2, 16)
            Bp = _round_up(B, TM)

    # Zero-pad to tile multiples. Padded K columns of x are exact zeros (also
    # in bf16), so they contribute nothing to either matmul even though
    # exp(clip(0)) == 1 in the padded weight columns. Padded output rows/cols
    # are sliced off below.
    x = x.astype(jnp.float32)
    mu_w = mu_w.astype(jnp.float32)
    if (Bp, Kp) != (B, n_in):
        x = jnp.pad(x, ((0, Bp - B), (0, Kp - n_in)))
    if (Np, Kp) != (n_out, n_in):
        mu_w = jnp.pad(mu_w, ((0, Np - n_out), (0, Kp - n_in)))
        logsig2_w = jnp.pad(logsig2_w, ((0, Np - n_out), (0, Kp - n_in)))
    x = x.astype(jnp.bfloat16)
    mu_w = mu_w.astype(jnp.bfloat16)
    bias2d = jnp.pad(bias, (0, Np - n_out)).reshape(1, Np)
    if (Bp, Np) != (B, n_out):
        eps = jnp.pad(eps, ((0, Bp - B), (0, Np - n_out)))

    grid = (Bp // TM, Np // TN, Kp // TK)

    # Double-buffered VMEM footprint (inputs + output) + scratch, with a bit
    # of headroom; capped so it stays sane on v7x's 64 MiB physical VMEM.
    vmem_bytes = (2 * TM * TK * 2        # x (bf16)
                  + 2 * TN * TK * 2      # mu_w (bf16)
                  + 2 * TN * TK * 4      # logsig2_w (f32)
                  + 2 * TM * TN * 4      # eps (f32)
                  + 2 * TM * TN * 4      # out (f32)
                  + TM * TN * 4          # var accumulator scratch
                  + 2 * TN * 4)          # bias
    vmem_limit = min(max(vmem_bytes + (4 << 20), 16 << 20), 60 << 20)

    out = pl.pallas_call(
        _prob_linear_kernel,
        out_shape=jax.ShapeDtypeStruct((Bp, Np), jnp.float32),
        grid_spec=pltpu.PrefetchScalarGridSpec(
            num_scalar_prefetch=0,
            grid=grid,
            in_specs=[
                pl.BlockSpec((TM, TK), lambda i, j, k: (i, k)),   # x (bf16)
                pl.BlockSpec((TN, TK), lambda i, j, k: (j, k)),   # mu_w (bf16)
                pl.BlockSpec((TN, TK), lambda i, j, k: (j, k)),   # logsig2_w (f32)
                pl.BlockSpec((1, TN), lambda i, j, k: (0, j)),    # bias
                pl.BlockSpec((TM, TN), lambda i, j, k: (i, j)),   # eps
            ],
            # Output index_map independent of k -> tile stays resident across
            # the reduction (mean accumulates directly into o_ref).
            out_specs=pl.BlockSpec((TM, TN), lambda i, j, k: (i, j)),
            scratch_shapes=[
                pltpu.VMEM((TM, TN), jnp.float32),   # variance accumulator
            ],
        ),
        compiler_params=pltpu.CompilerParams(
            dimension_semantics=("parallel", "parallel", "arbitrary"),
            vmem_limit_bytes=int(vmem_limit),
        ),
    )(x, mu_w, logsig2_w, bias2d, eps)

    return out[:B, :n_out]


def _reference(x, mu_w, logsig2_w, bias, eps):
    mu_out = x @ mu_w.T + bias
    s2_w = jnp.exp(jnp.clip(logsig2_w, -11.0, 11.0))
    var_out = (x * x) @ s2_w.T + 1e-8
    return mu_out + jnp.sqrt(var_out) * eps


if __name__ == "__main__":
    # Small shapes consistent with an nn.Linear-style module.
    B, n_in, n_out = 8, 32, 16

    key = jax.random.PRNGKey(0)
    k_x, k_mu, k_ls, k_eps = jax.random.split(key, 4)

    # Deterministic parameter init mirroring reset_parameters():
    stdv = 1.0 / math.sqrt(n_in)
    mu_w = stdv * jax.random.normal(k_mu, (n_out, n_in), dtype=jnp.float32)
    logsig2_w = -9.0 + 0.001 * jax.random.normal(k_ls, (n_out, n_in),
                                                 dtype=jnp.float32)
    bias = jnp.zeros((n_out,), dtype=jnp.float32)

    x = jax.random.normal(k_x, (B, n_in), dtype=jnp.float32)
    # Noise for the reparameterized sample (th.randn_like(mu_out) equivalent).
    eps = jax.random.normal(k_eps, (B, n_out), dtype=jnp.float32)

    out = prob_linear_forward(x, mu_w, logsig2_w, bias, eps)
    out = jax.block_until_ready(out)

    ref = _reference(x, mu_w, logsig2_w, bias, eps)
    assert out.shape == (B, n_out)
    # bf16 matmul operands (f32 accumulation) -> compare at bf16-level tolerance.
    assert jnp.allclose(out, ref, atol=2e-2, rtol=2e-2), "mismatch vs reference"

    print("KERNEL_OK")
</pallas_src>

<mosaic_0001>
module attributes {stable_mosaic.version = 11 : i64} {
  func.func @_prob_linear_kernel(%arg0: i32, %arg1: i32, %arg2: i32, %arg3: memref<16x128xbf16, #tpu.memory_space<vmem>>, %arg4: memref<128x128xbf16, #tpu.memory_space<vmem>>, %arg5: memref<128x128xf32, #tpu.memory_space<vmem>>, %arg6: memref<1x128xf32, #tpu.memory_space<vmem>>, %arg7: memref<16x128xf32, #tpu.memory_space<vmem>>, %arg8: memref<16x128xf32, #tpu.memory_space<vmem>>, %arg9: memref<16x128xf32, #tpu.memory_space<vmem>>) attributes {dimension_semantics = [#tpu.dimension_semantics<parallel>, #tpu.dimension_semantics<parallel>, #tpu.dimension_semantics<arbitrary>], iteration_bounds = array<i64: 1, 1, 1>, scalar_prefetch = 0 : i64, scratch_operands = 1 : i64, tpu.core_type = #tpu.core_type<tc>, window_params = [{transform_indices = @transform_0, window_bounds = array<i64: 16, 128>}, {transform_indices = @transform_1, window_bounds = array<i64: 128, 128>}, {transform_indices = @transform_2, window_bounds = array<i64: 128, 128>}, {transform_indices = @transform_3, window_bounds = array<i64: 1, 128>}, {transform_indices = @transform_4, window_bounds = array<i64: 16, 128>}, {transform_indices = @transform_5, window_bounds = array<i64: 16, 128>}]} {
    %c0_i32 = arith.constant 0 : i32
    %0 = arith.cmpi eq, %arg2, %c0_i32 : i32
    %1 = arith.extui %0 : i1 to i32
    %c0_i32_0 = arith.constant 0 : i32
    %2 = arith.cmpi ne, %1, %c0_i32_0 : i32
    scf.if %2 {
      %c0_19 = arith.constant 0 : index
      %c0_20 = arith.constant 0 : index
      %26 = vector.load %arg6[%c0_19, %c0_20] : memref<1x128xf32, #tpu.memory_space<vmem>>, vector<1x128xf32>
      %27 = vector.shape_cast %26 : vector<1x128xf32> to vector<1x128xf32>
      %28 = vector.broadcast %27 : vector<1x128xf32> to vector<16x128xf32>
      %c0_21 = arith.constant 0 : index
      %c0_22 = arith.constant 0 : index
      %29 = vector.load %arg8[%c0_21, %c0_22] : memref<16x128xf32, #tpu.memory_space<vmem>>, vector<16x128xf32>
      tpu.vector_store %arg8[%c0_21, %c0_22], %28 {strides = array<i32>} : memref<16x128xf32, #tpu.memory_space<vmem>>, vector<16x128xf32>,
      %cst_23 = arith.constant 9.99999993E-9 : f32
      %30 = vector.broadcast %cst_23 : f32 to vector<16x128xf32>
      %c0_24 = arith.constant 0 : index
      %c0_25 = arith.constant 0 : index
      %31 = vector.load %arg9[%c0_24, %c0_25] : memref<16x128xf32, #tpu.memory_space<vmem>>, vector<16x128xf32>
      tpu.vector_store %arg9[%c0_24, %c0_25], %30 {strides = array<i32>} : memref<16x128xf32, #tpu.memory_space<vmem>>, vector<16x128xf32>,
    } else {
    }
    %c0 = arith.constant 0 : index
    %c0_1 = arith.constant 0 : index
    %3 = vector.load %arg3[%c0, %c0_1] : memref<16x128xbf16, #tpu.memory_space<vmem>>, vector<16x128xbf16>
    %c0_2 = arith.constant 0 : index
    %c0_3 = arith.constant 0 : index
    %4 = vector.load %arg4[%c0_2, %c0_3] : memref<128x128xbf16, #tpu.memory_space<vmem>>, vector<128x128xbf16>
    %c0_4 = arith.constant 0 : index
    %c0_5 = arith.constant 0 : index
    %5 = vector.load %arg5[%c0_4, %c0_5] : memref<128x128xf32, #tpu.memory_space<vmem>>, vector<128x128xf32>
    %c0_6 = arith.constant 0 : index
    %c0_7 = arith.constant 0 : index
    %6 = vector.load %arg8[%c0_6, %c0_7] : memref<16x128xf32, #tpu.memory_space<vmem>>, vector<16x128xf32>
    %cst = arith.constant dense<0.000000e+00> : vector<16x128xf32>
    %7 = tpu.matmul %3, %4, %cst {dimension_numbers = #tpu.dot_dimension_numbers<[1], [1], [0], [0], [0, 0, 1, 0], [], []>} : vector<16x128xbf16>, vector<128x128xbf16>, vector<16x128xf32> -> vector<16x128xf32>
    %8 = arith.addf %6, %7 : vector<16x128xf32>
    %c0_8 = arith.constant 0 : index
    %c0_9 = arith.constant 0 : index
    %9 = vector.load %arg8[%c0_8, %c0_9] : memref<16x128xf32, #tpu.memory_space<vmem>>, vector<16x128xf32>
    tpu.vector_store %arg8[%c0_8, %c0_9], %8 {strides = array<i32>} : memref<16x128xf32, #tpu.memory_space<vmem>>, vector<16x128xf32>,
    %10 = arith.extf %3 : vector<16x128xbf16> to vector<16x128xf32>
    %11 = arith.mulf %10, %10 : vector<16x128xf32>
    %12 = arith.truncf %11 : vector<16x128xf32> to vector<16x128xbf16>
    %cst_10 = arith.constant -1.100000e+01 : f32
    %cst_11 = arith.constant 1.100000e+01 : f32
    %13 = vector.broadcast %cst_10 : f32 to vector<128x128xf32>
    %14 = arith.maximumf %13, %5 : vector<128x128xf32>
    %15 = vector.broadcast %cst_11 : f32 to vector<128x128xf32>
    %16 = arith.minimumf %15, %14 : vector<128x128xf32>
    %17 = math.exp %16 : vector<128x128xf32>
    %18 = arith.truncf %17 : vector<128x128xf32> to vector<128x128xbf16>
    %c0_12 = arith.constant 0 : index
    %c0_13 = arith.constant 0 : index
    %19 = vector.load %arg9[%c0_12, %c0_13] : memref<16x128xf32, #tpu.memory_space<vmem>>, vector<16x128xf32>
    %cst_14 = arith.constant dense<0.000000e+00> : vector<16x128xf32>
    %20 = tpu.matmul %12, %18, %cst_14 {dimension_numbers = #tpu.dot_dimension_numbers<[1], [1], [0], [0], [0, 0, 1, 0], [], []>} : vector<16x128xbf16>, vector<128x128xbf16>, vector<16x128xf32> -> vector<16x128xf32>
    %21 = arith.addf %19, %20 : vector<16x128xf32>
    %c0_15 = arith.constant 0 : index
    %c0_16 = arith.constant 0 : index
    %22 = vector.load %arg9[%c0_15, %c0_16] : memref<16x128xf32, #tpu.memory_space<vmem>>, vector<16x128xf32>
    tpu.vector_store %arg9[%c0_15, %c0_16], %21 {strides = array<i32>} : memref<16x128xf32, #tpu.memory_space<vmem>>, vector<16x128xf32>,
    %c0_i32_17 = arith.constant 0 : i32
    %23 = arith.cmpi eq, %arg2, %c0_i32_17 : i32
    %24 = arith.extui %23 : i1 to i32
    %c0_i32_18 = arith.constant 0 : i32
    %25 = arith.cmpi ne, %24, %c0_i32_18 : i32
    scf.if %25 {
      %c0_19 = arith.constant 0 : index
      %c0_20 = arith.constant 0 : index
      %26 = vector.load %arg8[%c0_19, %c0_20] : memref<16x128xf32, #tpu.memory_space<vmem>>, vector<16x128xf32>
      %c0_21 = arith.constant 0 : index
      %c0_22 = arith.constant 0 : index
      %27 = vector.load %arg9[%c0_21, %c0_22] : memref<16x128xf32, #tpu.memory_space<vmem>>, vector<16x128xf32>
      %28 = math.sqrt %27 : vector<16x128xf32>
      %c0_23 = arith.constant 0 : index
      %c0_24 = arith.constant 0 : index
      %29 = vector.load %arg7[%c0_23, %c0_24] : memref<16x128xf32, #tpu.memory_space<vmem>>, vector<16x128xf32>
      %30 = arith.mulf %28, %29 : vector<16x128xf32>
      %31 = arith.addf %26, %30 : vector<16x128xf32>
      %c0_25 = arith.constant 0 : index
      %c0_26 = arith.constant 0 : index
      %32 = vector.load %arg8[%c0_25, %c0_26] : memref<16x128xf32, #tpu.memory_space<vmem>>, vector<16x128xf32>
      tpu.vector_store %arg8[%c0_25, %c0_26], %31 {strides = array<i32>} : memref<16x128xf32, #tpu.memory_space<vmem>>, vector<16x128xf32>,
    } else {
    }
    return
  }
  func.func @transform_0(%arg0: i32, %arg1: i32, %arg2: i32) -> (i32, i32) {
    %c0_i32 = arith.constant 0 : i32
    return %arg0, %arg2 : i32, i32
  }
  func.func @transform_1(%arg0: i32, %arg1: i32, %arg2: i32) -> (i32, i32) {
    %c0_i32 = arith.constant 0 : i32
    return %arg1, %arg2 : i32, i32
  }
  func.func @transform_2(%arg0: i32, %arg1: i32, %arg2: i32) -> (i32, i32) {
    %c0_i32 = arith.constant 0 : i32
    return %arg1, %arg2 : i32, i32
  }
  func.func @transform_3(%arg0: i32, %arg1: i32, %arg2: i32) -> (i32, i32) {
    %c0_i32 = arith.constant 0 : i32
    %c0_i32_0 = arith.constant 0 : i32
    return %c0_i32, %arg1 : i32, i32
  }
  func.func @transform_4(%arg0: i32, %arg1: i32, %arg2: i32) -> (i32, i32) {
    %c0_i32 = arith.constant 0 : i32
    return %arg0, %arg1 : i32, i32
  }
  func.func @transform_5(%arg0: i32, %arg1: i32, %arg2: i32) -> (i32, i32) {
    %c0_i32 = arith.constant 0 : i32
    return %arg0, %arg1 : i32, i32
  }
}

</mosaic_0001>

<llo_original>
// kernel: tpu_custom_call.1
$region0: #{tpu_custom_call.1}
  #allocation0 [shape = 'u32[]', space=smem, size = 0x4, offset = 0x4, fixed_abs, tag = 'smem constant byte address 0x4 - core index']
  #allocation1 [shape = 'u32[72,128]{1,0:T(1,128)}', space=vmem, size = 0x9000, scoped, tag = 'internal scratch']
  #allocation2 [shape = 'f32[16,128]{1,0:T(8,128)}', space=vmem, size = 0x2000, scoped, tag = 'scratch operand']
  %s0 = inlined_call_operand.hbm [shape: bf16[16,128], index: 0, kind: input, shape index: {}]
  %s1 = inlined_call_operand.hbm [shape: bf16[128,128], index: 1, kind: input, shape index: {}]
  %s2 = inlined_call_operand.hbm [shape: f32[128,128], index: 2, kind: input, shape index: {}]
  %s3 = inlined_call_operand.vmem [shape: f32[1,128], index: 3, kind: input, shape index: {}]
  %s4 = inlined_call_operand.hbm [shape: f32[16,128], index: 4, kind: input, shape index: {}]
  %s5 = inlined_call_operand.hbm [shape: f32[16,128], index: 5, kind: output, shape index: {}]
  %s6 = sld [smem:[#allocation0]]
  $region54: #{tpu_custom_call.1} parent=0
    _
  %s8 = ssub.s32 1, %s6
  %s9 = scalar_select 0, %s8, %s6
  $region1: #{tpu_custom_call.1} parent=0
    #allocation3 [shape = 'u8[4096]{0}', space=vmem, size = 0x1000, scoped, tag = 'input window, operand 0, single buffered']
    #allocation4 [shape = 's32[1]{0}', space=sflag, size = 0x4, scoped, tag = 'scoped memory for tpu_custom_call.1']
    #allocation5 [shape = 's32[1]{0}', space=sflag, size = 0x4, scoped, tag = 'scoped memory for tpu_custom_call.1']
    #allocation6 [shape = 'u8[32768]{0}', space=vmem, size = 0x8000, scoped, tag = 'input window, operand 1, single buffered']
    #allocation7 [shape = 's32[1]{0}', space=sflag, size = 0x4, scoped, tag = 'scoped memory for tpu_custom_call.1']
    #allocation8 [shape = 'u8[65536]{0}', space=vmem, size = 0x10000, scoped, tag = 'input window, operand 2, single buffered']
    #allocation9 [shape = 'u8[8192]{0}', space=vmem, size = 0x2000, scoped, tag = 'input window, operand 4, single buffered']
    #allocation10 [shape = 's32[1]{0}', space=sflag, size = 0x4, scoped, tag = 'scoped memory for tpu_custom_call.1']
    #allocation11 [shape = 'u8[8192]{0}', space=vmem, size = 0x2000, scoped, tag = 'output window, operand 0, single buffered']
    %10 = vsyncpa [#allocation4], 0
    %11 = vsyncpa [#allocation7], 0
    %12 = vsyncpa [#allocation10], 0
    %13 = vsyncpa [#allocation5], 0
    // Predicated region
    $region2: #{tpu_custom_call.1} parent=1 // pred_check
      _
    $region3: #{tpu_custom_call.1} parent=1 // pred_check_branch
      %15 = sbr.rel (0) target = $region5
    $region4: #{tpu_custom_call.1} parent=1 // pred_region
      %17 = vsyncadd [#allocation4], 0
      %s18 = sshll.u32 %s0, 4
      %s19 = int_to_ptr.hbm [resolvable:$true] %s18
      %s20 = sshll.u32 [#allocation3], 4
      %s21 = int_to_ptr.vmem [resolvable:$true] %s20
      %26 = dma.hbm_to_vmem [thread:$0]  %s19, 128, %s21, [#allocation4], 64, 64, 4
    $region5: #{tpu_custom_call.1} parent=1 // pred_fallthru
      _
    // Predicated region
    $region6: #{tpu_custom_call.1} parent=1 // pred_check
      _
    $region7: #{tpu_custom_call.1} parent=1 // pred_check_branch
      %28 = sbr.rel (0) target = $region9
    $region8: #{tpu_custom_call.1} parent=1 // pred_region
      %30 = vsyncadd [#allocation7], 0
      %s31 = sshll.u32 %s1, 4
      %s32 = int_to_ptr.hbm [resolvable:$true] %s31
      %s33 = sshll.u32 [#allocation6], 4
      %s34 = int_to_ptr.vmem [resolvable:$true] %s33
      %39 = dma.hbm_to_vmem [thread:$0]  %s32, 1024, %s34, [#allocation7], 64, 64, 4
    $region9: #{tpu_custom_call.1} parent=1 // pred_fallthru
      _
    // Predicated region
    $region10: #{tpu_custom_call.1} parent=1 // pred_check
      _
    $region11: #{tpu_custom_call.1} parent=1 // pred_check_branch
      %41 = sbr.rel (0) target = $region13
    $region12: #{tpu_custom_call.1} parent=1 // pred_region
      %43 = vsyncadd [#allocation7], 0
      %s44 = sshll.u32 %s2, 4
      %s45 = int_to_ptr.hbm [resolvable:$true] %s44
      %s46 = sshll.u32 [#allocation8], 4
      %s47 = int_to_ptr.vmem [resolvable:$true] %s46
      %52 = dma.hbm_to_vmem [thread:$0]  %s45, 2048, %s47, [#allocation7], 128, 128, 8
    $region13: #{tpu_custom_call.1} parent=1 // pred_fallthru
      _
    // Predicated region
    $region14: #{tpu_custom_call.1} parent=1 // pred_check
      _
    $region15: #{tpu_custom_call.1} parent=1 // pred_check_branch
      %54 = sbr.rel (0) target = $region17
    $region16: #{tpu_custom_call.1} parent=1 // pred_region
      _
    $region17: #{tpu_custom_call.1} parent=1 // pred_fallthru
      _
    // Predicated region
    $region18: #{tpu_custom_call.1} parent=1 // pred_check
      _
    $region19: #{tpu_custom_call.1} parent=1 // pred_check_branch
      %56 = sbr.rel (0) target = $region21
    $region20: #{tpu_custom_call.1} parent=1 // pred_region
      %58 = vsyncadd [#allocation10], 0
      %s59 = sshll.u32 %s4, 4
      %s60 = int_to_ptr.hbm [resolvable:$true] %s59
      %s61 = sshll.u32 [#allocation9], 4
      %s62 = int_to_ptr.vmem [resolvable:$true] %s61
      %67 = dma.hbm_to_vmem [thread:$0]  %s60, 256, %s62, [#allocation10], 128, 128, 8
    $region21: #{tpu_custom_call.1} parent=1 // pred_fallthru
      _
    // Predicated region
    $region22: #{tpu_custom_call.1} parent=1 // pred_check
      _
    $region23: #{tpu_custom_call.1} parent=1 // pred_check_branch
      %69 = sbr.rel (0) target = $region25
    $region24: #{tpu_custom_call.1} parent=1 // pred_region
      %71 = dma.done [#allocation4], 128
    $region25: #{tpu_custom_call.1} parent=1 // pred_fallthru
      _
    // Predicated region
    $region26: #{tpu_custom_call.1} parent=1 // pred_check
      _
    $region27: #{tpu_custom_call.1} parent=1 // pred_check_branch
      %73 = sbr.rel (0) target = $region29
    $region28: #{tpu_custom_call.1} parent=1 // pred_region
      %75 = dma.done [#allocation7], 1024
    $region29: #{tpu_custom_call.1} parent=1 // pred_fallthru
      _
    // Predicated region
    $region30: #{tpu_custom_call.1} parent=1 // pred_check
      _
    $region31: #{tpu_custom_call.1} parent=1 // pred_check_branch
      %77 = sbr.rel (0) target = $region33
    $region32: #{tpu_custom_call.1} parent=1 // pred_region
      %79 = dma.done [#allocation7], 2048
    $region33: #{tpu_custom_call.1} parent=1 // pred_fallthru
      _
    // Predicated region
    $region34: #{tpu_custom_call.1} parent=1 // pred_check
      _
    $region35: #{tpu_custom_call.1} parent=1 // pred_check_branch
      %81 = sbr.rel (0) target = $region37
    $region36: #{tpu_custom_call.1} parent=1 // pred_region
      %83 = dma.done [#allocation10], 256
    $region37: #{tpu_custom_call.1} parent=1 // pred_fallthru
      _
    %p84 = scmp.eq.s32.totalorder 0, 0
    // Predicated region
    $region38: #{tpu_custom_call.1} parent=1 // pred_check
      %p85 = pneg %p84
    $region39: #{tpu_custom_call.1} parent=1 // pred_check_branch
      %87 = sbr.rel (%p85) target = $region41
    $region40: #{tpu_custom_call.1} parent=1 // pred_region
      %v88 = vld [vmem:[%s3] sm:$0x1]
      %v90 = vperm.slane %v88, 0
      %92 = vst [vmem:[#allocation11] sm:$0xff] %v90
      %93 = vst [vmem:[#allocation11 + $0x8] sm:$0xff] %v90
      %94 = vst [vmem:[#allocation2] sm:$0xff] 1e-08
      %95 = vst [vmem:[#allocation2 + $0x8] sm:$0xff] 1e-08
    $region41: #{tpu_custom_call.1} parent=1 // pred_fallthru
      _
    %v96 = vld [vmem:[#allocation3] sm:$0xf]
    %v97 = vld [vmem:[#allocation3 + $0x4] sm:$0xf]
    %v98 = vld [vmem:[#allocation6] sm:$0xf]
    %v99 = vld [vmem:[#allocation6 + $0x4] sm:$0xf]
    %v100 = vld [vmem:[#allocation6 + $0x8] sm:$0xf]
    %v101 = vld [vmem:[#allocation6 + $0xc] sm:$0xf]
    %v102 = vld [vmem:[#allocation6 + $0x10] sm:$0xf]
    %v103 = vld [vmem:[#allocation6 + $0x14] sm:$0xf]
    %v104 = vld [vmem:[#allocation6 + $0x18] sm:$0xf]
    %v105 = vld [vmem:[#allocation6 + $0x1c] sm:$0xf]
    %v106 = vld [vmem:[#allocation6 + $0x20] sm:$0xf]
    %v107 = vld [vmem:[#allocation6 + $0x24] sm:$0xf]
    %v108 = vld [vmem:[#allocation6 + $0x28] sm:$0xf]
    %v109 = vld [vmem:[#allocation6 + $0x2c] sm:$0xf]
    %v110 = vld [vmem:[#allocation6 + $0x30] sm:$0xf]
    %v111 = vld [vmem:[#allocation6 + $0x34] sm:$0xf]
    %v112 = vld [vmem:[#allocation6 + $0x38] sm:$0xf]
    %v113 = vld [vmem:[#allocation6 + $0x3c] sm:$0xf]
    %v114 = vld [vmem:[#allocation8] sm:$0xff]
    %v115 = vld [vmem:[#allocation8 + $0x8] sm:$0xff]
    %v116 = vld [vmem:[#allocation8 + $0x10] sm:$0xff]
    %v117 = vld [vmem:[#allocation8 + $0x18] sm:$0xff]
    %v118 = vld [vmem:[#allocation8 + $0x20] sm:$0xff]
    %v119 = vld [vmem:[#allocation8 + $0x28] sm:$0xff]
    %v120 = vld [vmem:[#allocation8 + $0x30] sm:$0xff]
    %v121 = vld [vmem:[#allocation8 + $0x38] sm:$0xff]
    %v122 = vld [vmem:[#allocation8 + $0x40] sm:$0xff]
    %v123 = vld [vmem:[#allocation8 + $0x48] sm:$0xff]
    %v124 = vld [vmem:[#allocation8 + $0x50] sm:$0xff]
    %v125 = vld [vmem:[#allocation8 + $0x58] sm:$0xff]
    %v126 = vld [vmem:[#allocation8 + $0x60] sm:$0xff]
    %v127 = vld [vmem:[#allocation8 + $0x68] sm:$0xff]
    %v128 = vld [vmem:[#allocation8 + $0x70] sm:$0xff]
    %v129 = vld [vmem:[#allocation8 + $0x78] sm:$0xff]
    %v130 = vld [vmem:[#allocation11] sm:$0xff]
    %v131 = vld [vmem:[#allocation11 + $0x8] sm:$0xff]
    %v134 = vunpack.c.l.b16 %v96
    %v135 = vunpack.c.l.b16 %v97
    %v136 = vpack.c.b16 %v135, %v134
    %v154 = vunpack.c.l.b16 %v98
    %v155 = vunpack.c.l.b16 %v99
    %v156 = vunpack.c.l.b16 %v100
    %v157 = vunpack.c.l.b16 %v101
    %v158 = vunpack.c.l.b16 %v102
    %v159 = vunpack.c.l.b16 %v103
    %v160 = vunpack.c.l.b16 %v104
    %v161 = vunpack.c.l.b16 %v105
    %v162 = vunpack.c.l.b16 %v106
    %v163 = vunpack.c.l.b16 %v107
    %v164 = vunpack.c.l.b16 %v108
    %v165 = vunpack.c.l.b16 %v109
    %v166 = vunpack.c.l.b16 %v110
    %v167 = vunpack.c.l.b16 %v111
    %v168 = vunpack.c.l.b16 %v112
    %v169 = vunpack.c.l.b16 %v113
    %v170 = vpack.c.b16 %v155, %v154
    %v171 = vpack.c.b16 %v157, %v156
    %v172 = vpack.c.b16 %v159, %v158
    %v173 = vpack.c.b16 %v161, %v160
    %v174 = vpack.c.b16 %v163, %v162
    %v175 = vpack.c.b16 %v165, %v164
    %v176 = vpack.c.b16 %v167, %v166
    %v177 = vpack.c.b16 %v169, %v168
    %186 = vmatpush.bf16.xpose.msra.mxu0 %v177
    %187 = vmatpush.bf16.xpose.msra.mxu0 %v176
    %188 = vmatpush.bf16.xpose.msra.mxu0 %v175
    %189 = vmatpush.bf16.xpose.msra.mxu0 %v174
    %190 = vmatpush.bf16.xpose.msra.mxu0 %v173
    %191 = vmatpush.bf16.xpose.msra.mxu0 %v172
    %192 = vmatpush.bf16.xpose.msra.mxu0 %v171
    %193 = vmatpush.bf16.xpose.msra.mxu0 %v170
    %194 = vmatmul.bf16.gmra.mxu0 %v136
    %v195 = vpop.f32.mrf.mxu0
    %v196 = vadd.f32 0.0, %v195
    %v197 = vpop.f32.mrf.mxu0
    %v198 = vadd.f32 0.0, %v197
    %199 = vdwg.mxu0
    %v200 = vadd.f32 %v130, %v196
    %v201 = vadd.f32 %v131, %v198
    %202 = vst [vmem:[#allocation11] sm:$0xff] %v200
    %203 = vst [vmem:[#allocation11 + $0x8] sm:$0xff] %v201
    %v204 = vunpack.c.l.bf16 %v96
    %v205 = vunpack.c.l.bf16 %v97
    %v206 = vmul.f32 %v204, %v204
    %v207 = vmul.f32 %v205, %v205
    %v208 = vpack.c.bf16 %v207, %v206
    %v209 = vmax.f32 %v114, -11.0
    %v210 = vmax.f32 %v115, -11.0
    %v211 = vmax.f32 %v116, -11.0
    %v212 = vmax.f32 %v117, -11.0
    %v213 = vmax.f32 %v118, -11.0
    %v214 = vmax.f32 %v119, -11.0
    %v215 = vmax.f32 %v120, -11.0
    %v216 = vmax.f32 %v121, -11.0
    %v217 = vmax.f32 %v122, -11.0
    %v218 = vmax.f32 %v123, -11.0
    %v219 = vmax.f32 %v124, -11.0
    %v220 = vmax.f32 %v125, -11.0
    %v221 = vmax.f32 %v126, -11.0
    %v222 = vmax.f32 %v127, -11.0
    %v223 = vmax.f32 %v128, -11.0
    %v224 = vmax.f32 %v129, -11.0
    %v225 = vmin.f32 %v209, 11.0
    %v226 = vmin.f32 %v210, 11.0
    %v227 = vmin.f32 %v211, 11.0
    %v228 = vmin.f32 %v212, 11.0
    %v229 = vmin.f32 %v213, 11.0
    %v230 = vmin.f32 %v214, 11.0
    %v231 = vmin.f32 %v215, 11.0
    %v232 = vmin.f32 %v216, 11.0
    %v233 = vmin.f32 %v217, 11.0
    %v234 = vmin.f32 %v218, 11.0
    %v235 = vmin.f32 %v219, 11.0
    %v236 = vmin.f32 %v220, 11.0
    %v237 = vmin.f32 %v221, 11.0
    %v238 = vmin.f32 %v222, 11.0
    %v239 = vmin.f32 %v223, 11.0
    %v240 = vmin.f32 %v224, 11.0
    %v241 = vmul.f32 %v225, 1.442695
    %v242 = vpow.pop %v241
    %v243 = vmul.f32 %v226, 1.442695
    %v244 = vpow.pop %v243
    %v245 = vmul.f32 %v227, 1.442695
    %v246 = vpow.pop %v245
    %v247 = vmul.f32 %v228, 1.442695
    %v248 = vpow.pop %v247
    %v249 = vmul.f32 %v229, 1.442695
    %v250 = vpow.pop %v249
    %v251 = vmul.f32 %v230, 1.442695
    %v252 = vpow.pop %v251
    %v253 = vmul.f32 %v231, 1.442695
    %v254 = vpow.pop %v253
    %v255 = vmul.f32 %v232, 1.442695
    %v256 = vpow.pop %v255
    %v257 = vmul.f32 %v233, 1.442695
    %v258 = vpow.pop %v257
    %v259 = vmul.f32 %v234, 1.442695
    %v260 = vpow.pop %v259
    %v261 = vmul.f32 %v235, 1.442695
    %v262 = vpow.pop %v261
    %v263 = vmul.f32 %v236, 1.442695
    %v264 = vpow.pop %v263
    %v265 = vmul.f32 %v237, 1.442695
    %v266 = vpow.pop %v265
    %v267 = vmul.f32 %v238, 1.442695
    %v268 = vpow.pop %v267
    %v269 = vmul.f32 %v239, 1.442695
    %v270 = vpow.pop %v269
    %v271 = vmul.f32 %v240, 1.442695
    %v272 = vpow.pop %v271
    %v273 = vpack.c.bf16 %v244, %v242
    %v274 = vpack.c.bf16 %v248, %v246
    %v275 = vpack.c.bf16 %v252, %v250
    %v276 = vpack.c.bf16 %v256, %v254
    %v277 = vpack.c.bf16 %v260, %v258
    %v278 = vpack.c.bf16 %v264, %v262
    %v279 = vpack.c.bf16 %v268, %v266
    %v280 = vpack.c.bf16 %v272, %v270
    %v281 = vld [vmem:[#allocation2] sm:$0xff]
    %v282 = vld [vmem:[#allocation2 + $0x8] sm:$0xff]
    %283 = vmatpush.bf16.xpose.msra.mxu0 %v280
    %284 = vmatpush.bf16.xpose.msra.mxu0 %v279
    %285 = vmatpush.bf16.xpose.msra.mxu0 %v278
    %286 = vmatpush.bf16.xpose.msra.mxu0 %v277
    %287 = vmatpush.bf16.xpose.msra.mxu0 %v276
    %288 = vmatpush.bf16.xpose.msra.mxu0 %v275
    %289 = vmatpush.bf16.xpose.msra.mxu0 %v274
    %290 = vmatpush.bf16.xpose.msra.mxu0 %v273
    %291 = vmatmul.bf16.gmra.mxu0 %v208
    %v292 = vpop.f32.mrf.mxu0
    %v293 = vadd.f32 0.0, %v292
    %v294 = vpop.f32.mrf.mxu0
    %v295 = vadd.f32 0.0, %v294
    %296 = vdwg.mxu0
    %v297 = vadd.f32 %v281, %v293
    %v298 = vadd.f32 %v282, %v295
    %299 = vst [vmem:[#allocation2] sm:$0xff] %v297
    %300 = vst [vmem:[#allocation2 + $0x8] sm:$0xff] %v298
    // Predicated region
    $region42: #{tpu_custom_call.1} parent=1 // pred_check
      %p301 = pneg %p84
    $region43: #{tpu_custom_call.1} parent=1 // pred_check_branch
      %303 = sbr.rel (%p301) target = $region45
    $region44: #{tpu_custom_call.1} parent=1 // pred_region
      %v304 = vld [vmem:[#allocation11] sm:$0xff]
      %v305 = vld [vmem:[#allocation11 + $0x8] sm:$0xff]
      %v306 = vld [vmem:[#allocation2] sm:$0xff]
      %v307 = vld [vmem:[#allocation2 + $0x8] sm:$0xff]
      %v308 = vrsqrt.pop %v306
      %v309 = vmul.f32 %v308, %v306
      %v310 = vmul.f32 %v309, %v308
      %v311 = vmul.f32 0.5, %v310
      %v312 = vsub.f32 1.5, %v311
      %v313 = vmul.f32 %v308, %v312
      %v314 = vmul.f32 %v306, %v313
      %vm315 = vcmp.eq.f32.partialorder %v306, inf
      %v316 = vsel %vm315, %v306, %v314
      %vm317 = vcmp.eq.f32.partialorder %v306, 0.0
      %v318 = vand.u32 %v306, 2147483648
      %v319 = vsel %vm317, %v318, %v316
      %v320 = vrsqrt.pop %v307
      %v321 = vmul.f32 %v320, %v307
      %v322 = vmul.f32 %v321, %v320
      %v323 = vmul.f32 0.5, %v322
      %v324 = vsub.f32 1.5, %v323
      %v325 = vmul.f32 %v320, %v324
      %v326 = vmul.f32 %v307, %v325
      %vm327 = vcmp.eq.f32.partialorder %v307, inf
      %v328 = vsel %vm327, %v307, %v326
      %vm329 = vcmp.eq.f32.partialorder %v307, 0.0
      %v330 = vand.u32 %v307, 2147483648
      %v331 = vsel %vm329, %v330, %v328
      %v332 = vld [vmem:[#allocation9] sm:$0xff]
      %v333 = vld [vmem:[#allocation9 + $0x8] sm:$0xff]
      %v334 = vmul.f32 %v319, %v332
      %v335 = vmul.f32 %v331, %v333
      %v336 = vadd.f32 %v304, %v334
      %v337 = vadd.f32 %v305, %v335
      %338 = vst [vmem:[#allocation11] sm:$0xff] %v336
      %339 = vst [vmem:[#allocation11 + $0x8] sm:$0xff] %v337
    $region45: #{tpu_custom_call.1} parent=1 // pred_fallthru
      _
    // Predicated region
    $region46: #{tpu_custom_call.1} parent=1 // pred_check
      _
    $region47: #{tpu_custom_call.1} parent=1 // pred_check_branch
      %341 = sbr.rel (0) target = $region49
    $region48: #{tpu_custom_call.1} parent=1 // pred_region
      %343 = vsyncadd [#allocation5], 0
      %s344 = sshll.u32 [#allocation11], 4
      %s345 = int_to_ptr.vmem [resolvable:$true] %s344
      %s346 = sshll.u32 %s5, 4
      %s347 = int_to_ptr.hbm [resolvable:$true] %s346
      %352 = dma.vmem_to_hbm [thread:$0]  %s345, 256, %s347, [#allocation5], 128, 128, 8
    $region49: #{tpu_custom_call.1} parent=1 // pred_fallthru
      _
    // Predicated region
    $region50: #{tpu_custom_call.1} parent=1 // pred_check
      _
    $region51: #{tpu_custom_call.1} parent=1 // pred_check_branch
      %354 = sbr.rel (0) target = $region53
    $region52: #{tpu_custom_call.1} parent=1 // pred_region
      %356 = dma.done [#allocation5], 256
    $region53: #{tpu_custom_call.1} parent=1 // pred_fallthru
      _
    %357 = vsyncpa [#allocation4], 1
    %358 = vsyncpa [#allocation7], 1
    %359 = vsyncpa [#allocation10], 1
    %360 = vsyncpa [#allocation5], 1

</llo_original>
